<compile_context>
chip_gen: v7x
topology: tpu7x:2x2x1
jax: 0.10.0
libtpu: 0.0.40
codegen_flags: <defaults>
</compile_context>

<pallas_src>
import functools
import math

import jax
import jax.numpy as jnp
from jax.experimental import pallas as pl
from jax.experimental.pallas import tpu as pltpu


# ---------------------------------------------------------------------------
# Reference table (the PyTorch register_buffer analog). Used only for testing
# and as the input of the fallback copy kernel; the fast path never reads it.
# ---------------------------------------------------------------------------
def make_positional_encoding(max_len, dim, dtype=jnp.float32):
    assert dim % 2 == 0, "even dim required (same implicit assumption as the PyTorch module)"
    position = jnp.arange(max_len, dtype=jnp.float32)[:, None]                  # (max_len, 1)
    div_term = jnp.exp(jnp.arange(0, dim, 2, dtype=jnp.float32) * -(math.log(10000.0) / dim))
    angles = position * div_term                                                # (max_len, dim//2)
    pe = jnp.zeros((max_len, dim), jnp.float32)
    pe = pe.at[:, 0::2].set(jnp.sin(angles))
    pe = pe.at[:, 1::2].set(jnp.cos(angles))
    return pe.astype(dtype)


# ---------------------------------------------------------------------------
# Tiling helpers
# ---------------------------------------------------------------------------
_MAX_BLOCK_BYTES = 8 * 1024 * 1024     # one block; x2 double-buffering stays well under the limit
_VMEM_LIMIT_BYTES = 32 * 1024 * 1024   # <= physical VMEM on v5e / v6e / v7x


def _choose_block_rows(total_rows, row_bytes, itemsize):
    """Largest dtype-aligned row tile within the per-block VMEM budget."""
    align = max(8, 32 // max(itemsize, 1))          # f32: 8, bf16: 16, 8-bit: 32 (sublane packing)
    cap = max(align, (_MAX_BLOCK_BYTES // max(row_bytes, 1)) // align * align)
    if total_rows % align != 0:
        # Either one full-extent block (allowed by the tiling rule) if it fits,
        # or aligned tiles with a ragged, masked final block.
        return total_rows if total_rows <= cap else cap
    block = min(total_rows, cap)
    # v7x megacore: give the 'parallel' grid axis >=2 steps when splitting still
    # leaves >=512-row blocks; on 1-TC chips the extra step costs ~0.35 us only.
    if block == total_rows and total_rows >= 1024 and (total_rows // 2) % align == 0:
        block = total_rows // 2
    return block


def _compiler_params():
    return pltpu.CompilerParams(
        dimension_semantics=("parallel",),
        vmem_limit_bytes=_VMEM_LIMIT_BYTES,
    )


# ---------------------------------------------------------------------------
# Kernels (write-only: no HBM reads; iota + EUP exp/sin/cos hide under the store)
# ---------------------------------------------------------------------------
def _pe_rowmajor_kernel(o_ref, *, neg_log_scale):
    """(block_s, dim) tile of the table; lane-dense when dim % 128 == 0."""
    block_s, dim = o_ref.shape
    row = jax.lax.broadcasted_iota(jnp.int32, (block_s, dim), 0)
    col = jax.lax.broadcasted_iota(jnp.int32, (block_s, dim), 1)
    pos = (row + pl.program_id(0) * block_s).astype(jnp.float32)
    col_f = col.astype(jnp.float32)
    two_i = 2.0 * jnp.floor(col_f * 0.5)             # 2 * (d // 2), exact in f32
    parity = col_f - two_i                           # 0.0 -> sin column, 1.0 -> cos column
    angle = pos * jnp.exp(two_i * neg_log_scale)
    val = jnp.where(parity == 0.0, jnp.sin(angle), jnp.cos(angle))
    o_ref[...] = val.astype(o_ref.dtype)


def _pe_flat_kernel(o_ref, *, dim, positions_per_row, neg_log_scale):
    """Lane-dense variant for dim < 128 with dim | 128: output laid out as
    (S*dim/128, 128); flat index f = 128*global_row + lane -> (f // dim, f % dim)."""
    block_rows, lanes = o_ref.shape                  # lanes == 128
    row = jax.lax.broadcasted_iota(jnp.int32, (block_rows, lanes), 0)
    lane = jax.lax.broadcasted_iota(jnp.int32, (block_rows, lanes), 1)
    lane_f = lane.astype(jnp.float32)
    lane_pos = jnp.floor(lane_f * (1.0 / dim))       # exact: lane < 128, dim is a power of two
    d = lane_f - lane_pos * dim                      # column within the encoding dim
    global_row = row + pl.program_id(0) * block_rows
    pos = (global_row * positions_per_row).astype(jnp.float32) + lane_pos
    two_i = 2.0 * jnp.floor(d * 0.5)
    parity = d - two_i
    angle = pos * jnp.exp(two_i * neg_log_scale)
    val = jnp.where(parity == 0.0, jnp.sin(angle), jnp.cos(angle))
    o_ref[...] = val.astype(o_ref.dtype)


def _pe_copy_kernel(pe_ref, o_ref):
    o_ref[...] = pe_ref[...].astype(o_ref.dtype)


# ---------------------------------------------------------------------------
# Wrappers
# ---------------------------------------------------------------------------
def _pe_generate(seq_len, dim, out_dtype):
    """Write-only Pallas generation of pe[:seq_len]; returns (1, seq_len, dim)."""
    neg_log_scale = -math.log(10000.0) / dim
    itemsize = jnp.dtype(out_dtype).itemsize

    if dim % 128 != 0 and 128 % dim == 0 and (seq_len * dim) % 128 == 0:
        # Small dim: flatten so every store is a full 128-lane vector store.
        total_rows = (seq_len * dim) // 128
        block_rows = _choose_block_rows(total_rows, 128 * itemsize, itemsize)
        out = pl.pallas_call(
            functools.partial(_pe_flat_kernel, dim=dim,
                              positions_per_row=128 // dim,
                              neg_log_scale=neg_log_scale),
            out_shape=jax.ShapeDtypeStruct((total_rows, 128), out_dtype),
            grid=(pl.cdiv(total_rows, block_rows),),
            out_specs=pl.BlockSpec((block_rows, 128), lambda i: (i, 0)),
            compiler_params=_compiler_params(),
        )()
    else:
        # Row-major (S, dim); lane-dense whenever dim % 128 == 0.
        block_rows = _choose_block_rows(seq_len, dim * itemsize, itemsize)
        out = pl.pallas_call(
            functools.partial(_pe_rowmajor_kernel, neg_log_scale=neg_log_scale),
            out_shape=jax.ShapeDtypeStruct((seq_len, dim), out_dtype),
            grid=(pl.cdiv(seq_len, block_rows),),
            out_specs=pl.BlockSpec((block_rows, dim), lambda i: (i, 0)),
            compiler_params=_compiler_params(),
        )()
    return out.reshape(1, seq_len, dim)


def _pe_copy_fallback(seq_len, dim, out_dtype):
    """Fallback copy kernel (2x HBM traffic) — only used if in-kernel sin/cos
    lowering is unavailable on the running jax/Mosaic version."""
    itemsize = jnp.dtype(out_dtype).itemsize
    pe = make_positional_encoding(seq_len, dim)      # build exactly the rows needed (no pre-slice copy)
    block_rows = _choose_block_rows(seq_len, dim * (4 + itemsize), itemsize)
    out = pl.pallas_call(
        _pe_copy_kernel,
        out_shape=jax.ShapeDtypeStruct((seq_len, dim), out_dtype),
        grid=(pl.cdiv(seq_len, block_rows),),
        in_specs=[pl.BlockSpec((block_rows, dim), lambda i: (i, 0))],
        out_specs=pl.BlockSpec((block_rows, dim), lambda i: (i, 0)),
        compiler_params=_compiler_params(),
    )(pe)
    return out.reshape(1, seq_len, dim)


class PositionalEncoding:
    """Pallas TPU port of the PyTorch PositionalEncoding module.

    forward(x) == pe[:, :x.size(1)] with shape (1, min(S, max_len), dim); only
    x's static sequence length is used (its values are never read).
    """

    def __init__(self, max_len, dim, out_dtype=jnp.float32):
        assert dim % 2 == 0, "dim must be even (same assumption as the PyTorch module)"
        self.max_len = int(max_len)
        self.dim = int(dim)
        self.out_dtype = jnp.dtype(out_dtype)

    def __call__(self, x):
        seq_len = min(int(x.shape[1]), self.max_len)   # pe[:, :S] clamps at max_len, like the buffer
        try:
            return _pe_generate(seq_len, self.dim, self.out_dtype)
        except Exception:
            # TODO(synk): drop this guard once in-kernel sin/cos Mosaic lowering is
            # confirmed on all deployed jax versions; the copy path doubles HBM traffic.
            return _pe_copy_fallback(seq_len, self.dim, self.out_dtype)

    forward = __call__


if __name__ == "__main__":
    key = jax.random.PRNGKey(0)

    # Case 1: module-implied small shapes (batch=2, seq=8, dim=32, max_len=16)
    # -> flat lane-dense path, single (2, 128) block.
    B, S, D, MAX_LEN = 2, 8, 32, 16
    x = jax.random.normal(key, (B, S, D), jnp.float32)
    mod = PositionalEncoding(MAX_LEN, D)
    out = jax.block_until_ready(mod(x))
    ref = make_positional_encoding(MAX_LEN, D)[None, :S]
    assert out.shape == (1, S, D)
    assert bool(jnp.all(jnp.isfinite(out)))
    assert bool(jnp.allclose(out, ref, atol=2e-3, rtol=2e-3))
    assert abs(float(out[0, 0, 0])) < 1e-5 and abs(float(out[0, 0, 1]) - 1.0) < 1e-5

    # Case 2: lane-dense row-major path (dim % 128 == 0), single 512-row block.
    S2, D2, MAX2 = 512, 128, 1024
    x2 = jax.random.normal(key, (1, S2, D2), jnp.float32)
    out2 = jax.block_until_ready(PositionalEncoding(MAX2, D2)(x2))
    ref2 = make_positional_encoding(MAX2, D2)[None, :S2]
    assert out2.shape == (1, S2, D2)
    assert bool(jnp.allclose(out2, ref2, atol=2e-3, rtol=2e-3))

    # Case 3: multi-step "parallel" grid (2 x 1024-row blocks) for v7x megacore.
    S3, D3, MAX3 = 2048, 128, 2048
    x3 = jax.random.normal(key, (1, S3, D3), jnp.float32)
    out3 = jax.block_until_ready(PositionalEncoding(MAX3, D3)(x3))
    ref3 = make_positional_encoding(MAX3, D3)[None, :S3]
    assert bool(jnp.allclose(out3, ref3, atol=2e-3, rtol=2e-3))

    # Case 4: S not a multiple of 8 -> single full-extent block, no pre-slice copy.
    S4, D4, MAX4 = 100, 256, 256
    x4 = jax.random.normal(key, (2, S4, D4), jnp.float32)
    out4 = jax.block_until_ready(PositionalEncoding(MAX4, D4)(x4))
    ref4 = make_positional_encoding(MAX4, D4)[None, :S4]
    assert out4.shape == (1, S4, D4)
    assert bool(jnp.allclose(out4, ref4, atol=2e-3, rtol=2e-3))

    # Case 5: bf16 output (generated in f32, cast at the store) + S > max_len clamp.
    mod5 = PositionalEncoding(MAX_LEN, D, out_dtype=jnp.bfloat16)
    x5 = jax.random.normal(key, (B, MAX_LEN + 8, D), jnp.float32)
    out5 = jax.block_until_ready(mod5(x5))
    assert out5.shape == (1, MAX_LEN, D) and out5.dtype == jnp.bfloat16
    assert bool(jnp.allclose(out5.astype(jnp.float32),
                             make_positional_encoding(MAX_LEN, D)[None],
                             atol=1e-2, rtol=1e-2))

    print("KERNEL_OK")
</pallas_src>

<mosaic_0001>
module attributes {stable_mosaic.version = 11 : i64} {
  func.func @_pe_copy_kernel(%arg0: i32, %arg1: memref<8x32xf32, #tpu.memory_space<vmem>>, %arg2: memref<8x32xf32, #tpu.memory_space<vmem>>) attributes {dimension_semantics = [#tpu.dimension_semantics<parallel>], iteration_bounds = array<i64: 1>, scalar_prefetch = 0 : i64, scratch_operands = 0 : i64, tpu.core_type = #tpu.core_type<tc>, window_params = [{transform_indices = @transform_0, window_bounds = array<i64: 8, 32>}, {transform_indices = @transform_1, window_bounds = array<i64: 8, 32>}]} {
    %c0 = arith.constant 0 : index
    %c0_0 = arith.constant 0 : index
    %0 = vector.load %arg1[%c0, %c0_0] : memref<8x32xf32, #tpu.memory_space<vmem>>, vector<8x32xf32>
    %c0_1 = arith.constant 0 : index
    %c0_2 = arith.constant 0 : index
    %1 = vector.load %arg2[%c0_1, %c0_2] : memref<8x32xf32, #tpu.memory_space<vmem>>, vector<8x32xf32>
    tpu.vector_store %arg2[%c0_1, %c0_2], %0 {strides = array<i32>} : memref<8x32xf32, #tpu.memory_space<vmem>>, vector<8x32xf32>,
    return
  }
  func.func @transform_0(%arg0: i32) -> (i32, i32) {
    %c0_i32 = arith.constant 0 : i32
    %c0_i32_0 = arith.constant 0 : i32
    return %arg0, %c0_i32 : i32, i32
  }
  func.func @transform_1(%arg0: i32) -> (i32, i32) {
    %c0_i32 = arith.constant 0 : i32
    %c0_i32_0 = arith.constant 0 : i32
    return %arg0, %c0_i32 : i32, i32
  }
}

</mosaic_0001>

<llo_original>
// kernel: tpu_custom_call.1
$region0: #{tpu_custom_call.1}
  #allocation0 [shape = 'u32[]', space=smem, size = 0x4, offset = 0x4, fixed_abs, tag = 'smem constant byte address 0x4 - core index']
  #allocation1 [shape = 'u32[144,128]{1,0:T(1,128)}', space=vmem, size = 0x12000, scoped, tag = 'internal scratch']
  %s0 = inlined_call_operand.hbm [shape: f32[8,32], index: 0, kind: input, shape index: {}]
  %s1 = inlined_call_operand.hbm [shape: f32[8,32], index: 1, kind: output, shape index: {}]
  %s2 = sld [smem:[#allocation0]]
  $region18: #{tpu_custom_call.1} parent=0
    _
  %s4 = ssub.s32 1, %s2
  %s5 = scalar_select 0, %s4, %s2
  $region1: #{tpu_custom_call.1} parent=0
    #allocation2 [shape = 'u8[4096]{0}', space=vmem, size = 0x1000, scoped, tag = 'input window, operand 0, single buffered']
    #allocation3 [shape = 's32[1]{0}', space=sflag, size = 0x4, scoped, tag = 'scoped memory for tpu_custom_call.1']
    #allocation4 [shape = 's32[1]{0}', space=sflag, size = 0x4, scoped, tag = 'scoped memory for tpu_custom_call.1']
    #allocation5 [shape = 'u8[4096]{0}', space=vmem, size = 0x1000, scoped, tag = 'output window, operand 0, single buffered']
    %6 = vsyncpa [#allocation3], 0
    %7 = vsyncpa [#allocation4], 0
    // Predicated region
    $region2: #{tpu_custom_call.1} parent=1 // pred_check
      _
    $region3: #{tpu_custom_call.1} parent=1 // pred_check_branch
      %9 = sbr.rel (0) target = $region5
    $region4: #{tpu_custom_call.1} parent=1 // pred_region
      %s11 = ssub.s32 128, 128
      %12 = vsyncadd [#allocation3], %s11
      %s14 = sshll.u32 [#allocation2], 4
      %s15 = int_to_ptr.vmem [resolvable:$true] %s14
      %17 = dma.hbm_to_vmem [thread:$0]  %s0, 128, %s15, [#allocation3]
    $region5: #{tpu_custom_call.1} parent=1 // pred_fallthru
      _
    // Predicated region
    $region6: #{tpu_custom_call.1} parent=1 // pred_check
      _
    $region7: #{tpu_custom_call.1} parent=1 // pred_check_branch
      %19 = sbr.rel (0) target = $region9
    $region8: #{tpu_custom_call.1} parent=1 // pred_region
      %20 = dma.done [#allocation3], 128
    $region9: #{tpu_custom_call.1} parent=1 // pred_fallthru
      _
    %v21 = vld [vmem:[#allocation2] sm:$0xff]
    %vm22 = vcmask 261120
    %23 = vst.msk [vmem:[#allocation5] sm:$0xff] %vm22, %v21
    // Predicated region
    $region10: #{tpu_custom_call.1} parent=1 // pred_check
      _
    $region11: #{tpu_custom_call.1} parent=1 // pred_check_branch
      %25 = sbr.rel (0) target = $region13
    $region12: #{tpu_custom_call.1} parent=1 // pred_region
      %s27 = ssub.s32 128, 128
      %28 = vsyncadd [#allocation4], %s27
      %s30 = sshll.u32 [#allocation5], 4
      %s31 = int_to_ptr.vmem [resolvable:$true] %s30
      %33 = dma.vmem_to_hbm [thread:$0]  %s31, 128, %s1, [#allocation4]
    $region13: #{tpu_custom_call.1} parent=1 // pred_fallthru
      _
    // Predicated region
    $region14: #{tpu_custom_call.1} parent=1 // pred_check
      _
    $region15: #{tpu_custom_call.1} parent=1 // pred_check_branch
      %35 = sbr.rel (0) target = $region17
    $region16: #{tpu_custom_call.1} parent=1 // pred_region
      %36 = dma.done [#allocation4], 128
    $region17: #{tpu_custom_call.1} parent=1 // pred_fallthru
      _
    %37 = vsyncpa [#allocation3], 1
    %38 = vsyncpa [#allocation4], 1

</llo_original>
